<compile_context>
chip_gen: v7x
topology: tpu7x:2x2x1
jax: 0.10.0
libtpu: 0.0.40
codegen_flags: <defaults>
</compile_context>

<pallas_src>
import functools

import jax
import jax.numpy as jnp
from jax import lax
from jax.experimental import pallas as pl
from jax.experimental.pallas import tpu as pltpu


def _round_up(x, m):
    return ((x + m - 1) // m) * m


def _cdiv(a, b):
    return (a + b - 1) // b


@functools.lru_cache(maxsize=1)
def _vmem_cap_bytes():
    """Per-core VMEM capacity of the attached generation (fallback: v7x's 64 MiB)."""
    try:
        return int(pltpu.get_tpu_info().vmem_capacity_bytes)
    except Exception:
        return 64 << 20


def _plan_dim(size, block, align, min_tiles=1):
    """Balanced tiling for one dim: tile ~<= block, multiple of `align`, chosen to
    minimize ceil padding. Returns (tile, padded_size)."""
    size_a = _round_up(size, align)
    n_tiles = max(_cdiv(size, block), min_tiles)
    tile = min(_round_up(_cdiv(size, n_tiles), align), size_a)
    return tile, _round_up(size, tile)


# -----------------------------------------------------------------------------
# Kernels
# -----------------------------------------------------------------------------
def _linear_single_block_kernel(x_ref, w_ref, b_ref, o_ref):
    # Whole problem in one VMEM block: one MXU dot + bias add.
    o_ref[...] = (
        jnp.dot(x_ref[...], w_ref[...], preferred_element_type=jnp.float32)
        + b_ref[...]
    ).astype(o_ref.dtype)


def _linear_kernel_f32_out(x_ref, w_ref, b_ref, o_ref):
    # f32 output: accumulate directly into the resident output block (no scratch).
    k = pl.program_id(2)

    @pl.when(k == 0)
    def _():
        o_ref[...] = jnp.zeros_like(o_ref)

    o_ref[...] += jnp.dot(x_ref[...], w_ref[...], preferred_element_type=jnp.float32)

    @pl.when(k == pl.num_programs(2) - 1)
    def _():
        o_ref[...] += b_ref[...]


def _linear_kernel_acc(x_ref, w_ref, b_ref, o_ref, acc_ref):
    # Non-f32 output: keep a resident f32 accumulator, cast on the last K step.
    k = pl.program_id(2)

    @pl.when(k == 0)
    def _():
        acc_ref[...] = jnp.zeros_like(acc_ref)

    acc_ref[...] += jnp.dot(x_ref[...], w_ref[...], preferred_element_type=jnp.float32)

    @pl.when(k == pl.num_programs(2) - 1)
    def _():
        o_ref[...] = (acc_ref[...] + b_ref[...]).astype(o_ref.dtype)


# -----------------------------------------------------------------------------
# One-time (init) parameter preparation — outside the jitted forward.
# -----------------------------------------------------------------------------
def prepare_linear_params(weight, bias, *, block_m=512, block_n=512, block_k=1024):
    """Transpose weight to [d_in, d_out] and zero-pad weight/bias to lane-dense tile
    multiples ONCE at init. Returns (w_t_padded, bias_padded, tn, tk)."""
    d_out, d_in = weight.shape

    min_n_tiles = 2 if d_out >= 256 else 1          # keep both v7x TensorCores busy
    tn, Np = _plan_dim(d_out, block_n, 128, min_n_tiles)
    tk, Kp = _plan_dim(d_in, block_k, 128, 1)

    # Generation-aware VMEM budget: shrink tk, then tn, until double-buffered
    # x/w/bias tiles + output/accumulator fit comfortably.
    budget = int(0.55 * _vmem_cap_bytes())
    itemsize = jnp.dtype(weight.dtype).itemsize

    def footprint(tk_, tn_):
        return (2 * (block_m * tk_ + tk_ * tn_ + tn_) * itemsize
                + 3 * block_m * tn_ * 4)

    while footprint(tk, tn) > budget and tk > 128:
        tk = _round_up(tk // 2, 128)
        Kp = _round_up(d_in, tk)
    while footprint(tk, tn) > budget and tn > 128:
        tn = _round_up(tn // 2, 128)
        Np = _round_up(d_out, tn)

    w_t = jnp.transpose(weight)                                   # (d_in, d_out)
    w_t = jnp.pad(w_t, ((0, Kp - d_in), (0, Np - d_out)))
    b = bias if bias is not None else jnp.zeros((d_out,), weight.dtype)
    b_p = jnp.pad(b, (0, Np - d_out)).reshape(1, Np)
    return w_t, b_p, int(tn), int(tk)


# -----------------------------------------------------------------------------
# Forward: y = x @ weight.T + bias   (exact nn.Linear semantics)
# -----------------------------------------------------------------------------
@functools.partial(
    jax.jit, static_argnames=("d_out", "tn", "tk", "block_m", "allow_fast_path"))
def linear_forward(x, w_t, b_p, *, d_out, tn, tk, block_m=512, allow_fast_path=True):
    """x: (B, d_in); w_t: (Kp, Np) pre-transposed+padded weight; b_p: (1, Np) padded bias."""
    B, d_in = x.shape
    Kp, Np = w_t.shape
    assert Np % tn == 0 and Kp % tk == 0

    # M tiling: prefer a single M tile so the weight is streamed from HBM exactly once.
    B_a = _round_up(B, 8)
    if B_a <= block_m:
        tm, Mp = B_a, B_a
    else:
        tm, Mp = _plan_dim(B, block_m, 8)

    # Only the activation is padded per call (weight/bias were padded at init).
    if Mp != B or Kp != d_in:
        x_p = jnp.pad(x, ((0, Mp - B), (0, Kp - d_in)))
    else:
        x_p = x

    itemsize = jnp.dtype(x.dtype).itemsize

    # --- Gridless single-block fast path for tiny problems -----------------
    total_bytes = (Mp * Kp + Kp * Np + Mp * Np + Np) * itemsize
    if allow_fast_path and total_bytes <= (2 << 20) and Mp <= 1024:
        out_p = pl.pallas_call(
            _linear_single_block_kernel,
            out_shape=jax.ShapeDtypeStruct((Mp, Np), x.dtype),
        )(x_p, w_t, b_p)
        return out_p[:B, :d_out]

    # --- Tiled (M, N, K) grid path ------------------------------------------
    grid = (Mp // tm, Np // tn, Kp // tk)
    direct_f32 = jnp.dtype(x.dtype) == jnp.dtype(jnp.float32)

    cost = pl.CostEstimate(
        flops=2 * Mp * Kp * Np,
        transcendentals=0,
        bytes_accessed=(
            grid[1] * Mp * Kp          # x re-read once per N tile
            + grid[0] * Kp * Np        # weight re-read once per M tile
            + grid[0] * Np             # bias re-read once per M tile
            + Mp * Np                  # output written once
        ) * itemsize,
    )

    acc_bytes = 0 if direct_f32 else tm * tn * 4
    needed = (2 * (tm * tk + tk * tn + tn) * itemsize
              + 2 * tm * tn * itemsize + acc_bytes)
    cap = _vmem_cap_bytes()
    vmem_limit = int(min(max(needed + (8 << 20), 16 << 20), (cap * 3) // 4))
    vmem_limit = max(vmem_limit, needed + (1 << 20))

    in_specs = [
        pl.BlockSpec((tm, tk), lambda i, j, k: (i, k)),   # x
        pl.BlockSpec((tk, tn), lambda i, j, k: (k, j)),   # weight.T (pre-transposed)
        pl.BlockSpec((1, tn), lambda i, j, k: (0, j)),    # bias (resident across K)
    ]
    out_spec = pl.BlockSpec((tm, tn), lambda i, j, k: (i, j))

    kernel = _linear_kernel_f32_out if direct_f32 else _linear_kernel_acc
    scratch = [] if direct_f32 else [pltpu.VMEM((tm, tn), jnp.float32)]

    out_p = pl.pallas_call(
        kernel,
        out_shape=jax.ShapeDtypeStruct((Mp, Np), x.dtype),
        grid_spec=pltpu.PrefetchScalarGridSpec(
            num_scalar_prefetch=0,
            grid=grid,
            in_specs=in_specs,
            out_specs=out_spec,
            scratch_shapes=scratch,
        ),
        compiler_params=pltpu.CompilerParams(
            dimension_semantics=("parallel", "parallel", "arbitrary"),
            vmem_limit_bytes=vmem_limit,
        ),
        cost_estimate=cost,
    )(x_p, w_t, b_p)

    return out_p[:B, :d_out]


# -----------------------------------------------------------------------------
# Self-test
# -----------------------------------------------------------------------------
if __name__ == "__main__":
    k1, k2, k3, k4, k5, k6 = jax.random.split(jax.random.PRNGKey(0), 6)

    # ---- Test 1: module-sized shapes (batch=8, input_dim=32, output_dim=10) ----
    # Exercises the gridless single-block fast path.
    batch, input_dim, output_dim = 8, 32, 10
    bound = 1.0 / (input_dim ** 0.5)
    weight = jax.random.uniform(k1, (output_dim, input_dim), jnp.float32, -bound, bound)
    bias = jax.random.uniform(k2, (output_dim,), jnp.float32, -bound, bound)
    x = jax.random.normal(k3, (batch, input_dim), jnp.float32)

    w_t, b_p, tn, tk = prepare_linear_params(weight, bias)
    y = linear_forward(x, w_t, b_p, d_out=output_dim, tn=tn, tk=tk)
    jax.block_until_ready(y)

    y_ref = jnp.dot(x, weight.T, precision=lax.Precision.HIGHEST) + bias
    assert y.shape == (batch, output_dim)
    assert jnp.allclose(y, y_ref, atol=1e-5, rtol=1e-5), \
        float(jnp.max(jnp.abs(y - y_ref)))

    # ---- Test 2: exercise the tiled (M, N, K) grid + resident-accumulator path ----
    B2, d_in2, d_out2 = 16, 512, 512
    bound2 = 1.0 / (d_in2 ** 0.5)
    weight2 = jax.random.uniform(k4, (d_out2, d_in2), jnp.float32, -bound2, bound2)
    bias2 = jax.random.uniform(k5, (d_out2,), jnp.float32, -bound2, bound2)
    x2 = jax.random.normal(k6, (B2, d_in2), jnp.float32)

    w_t2, b_p2, tn2, tk2 = prepare_linear_params(weight2, bias2, block_n=256, block_k=256)
    y2 = linear_forward(x2, w_t2, b_p2, d_out=d_out2, tn=tn2, tk=tk2,
                        allow_fast_path=False)
    jax.block_until_ready(y2)

    y2_ref = jnp.dot(x2, weight2.T, precision=lax.Precision.HIGHEST) + bias2
    assert y2.shape == (B2, d_out2)
    assert jnp.allclose(y2, y2_ref, atol=1e-4, rtol=1e-4), \
        float(jnp.max(jnp.abs(y2 - y2_ref)))

    print("KERNEL_OK")
</pallas_src>

<mosaic_0001>
module attributes {stable_mosaic.version = 11 : i64} {
  func.func @_linear_single_block_kernel(%arg0: memref<8x128xf32, #tpu.memory_space<vmem>>, %arg1: memref<128x128xf32, #tpu.memory_space<vmem>>, %arg2: memref<1x128xf32, #tpu.memory_space<vmem>>, %arg3: memref<8x128xf32, #tpu.memory_space<vmem>>) attributes {dimension_semantics = [], scalar_prefetch = 0 : i64, scratch_operands = 0 : i64, tpu.core_type = #tpu.core_type<tc>} {
    %c0 = arith.constant 0 : index
    %c0_0 = arith.constant 0 : index
    %0 = vector.load %arg0[%c0, %c0_0] : memref<8x128xf32, #tpu.memory_space<vmem>>, vector<8x128xf32>
    %c0_1 = arith.constant 0 : index
    %c0_2 = arith.constant 0 : index
    %1 = vector.load %arg1[%c0_1, %c0_2] : memref<128x128xf32, #tpu.memory_space<vmem>>, vector<128x128xf32>
    %cst = arith.constant dense<0.000000e+00> : vector<8x128xf32>
    %2 = tpu.matmul %0, %1, %cst {dimension_numbers = #tpu.dot_dimension_numbers<[1], [0], [0], [1], [0, 0, 1, 1], [], []>} : vector<8x128xf32>, vector<128x128xf32>, vector<8x128xf32> -> vector<8x128xf32>
    %c0_3 = arith.constant 0 : index
    %c0_4 = arith.constant 0 : index
    %3 = vector.load %arg2[%c0_3, %c0_4] : memref<1x128xf32, #tpu.memory_space<vmem>>, vector<1x128xf32>
    %4 = vector.broadcast %3 : vector<1x128xf32> to vector<8x128xf32>
    %5 = arith.addf %2, %4 : vector<8x128xf32>
    %c0_5 = arith.constant 0 : index
    %c0_6 = arith.constant 0 : index
    %6 = vector.load %arg3[%c0_5, %c0_6] : memref<8x128xf32, #tpu.memory_space<vmem>>, vector<8x128xf32>
    tpu.vector_store %arg3[%c0_5, %c0_6], %5 {strides = array<i32>} : memref<8x128xf32, #tpu.memory_space<vmem>>, vector<8x128xf32>,
    return
  }
}

</mosaic_0001>

<llo_original>
// kernel: linear_forward.1
$region0: #{linear_forward.1}
  #allocation0 [shape = 'u32[]', space=smem, size = 0x4, offset = 0x4, fixed_abs, tag = 'smem constant byte address 0x4 - core index']
  #allocation1 [shape = 'u32[144,128]{1,0:T(1,128)}', space=vmem, size = 0x12000, scoped, tag = 'internal scratch']
  %s0 = inlined_call_operand.vmem [shape: f32[8,128], index: 0, kind: input, shape index: {}]
  %s1 = inlined_call_operand.hbm [shape: f32[128,128], index: 1, kind: input, shape index: {}]
  %s2 = inlined_call_operand.vmem [shape: f32[1,128], index: 2, kind: input, shape index: {}]
  %s3 = inlined_call_operand.hbm [shape: f32[8,128], index: 3, kind: output, shape index: {}]
  %s4 = sld [smem:[#allocation0]]
  $region26: #{linear_forward.1} parent=0
    _
  %s6 = ssub.s32 1, %s4
  %s7 = scalar_select 0, %s6, %s4
  $region1: #{linear_forward.1} parent=0
    #allocation2 [shape = 'u8[65536]{0}', space=vmem, size = 0x10000, scoped, tag = 'input window, operand 1, single buffered']
    #allocation3 [shape = 's32[1]{0}', space=sflag, size = 0x4, scoped, tag = 'scoped memory for linear_forward.1']
    #allocation4 [shape = 's32[1]{0}', space=sflag, size = 0x4, scoped, tag = 'scoped memory for linear_forward.1']
    #allocation5 [shape = 'u8[4096]{0}', space=vmem, size = 0x1000, scoped, tag = 'output window, operand 0, single buffered']
    %8 = vsyncpa [#allocation3], 0
    %9 = vsyncpa [#allocation4], 0
    // Predicated region
    $region2: #{linear_forward.1} parent=1 // pred_check
      _
    $region3: #{linear_forward.1} parent=1 // pred_check_branch
      %11 = sbr.rel (0) target = $region5
    $region4: #{linear_forward.1} parent=1 // pred_region
      _
    $region5: #{linear_forward.1} parent=1 // pred_fallthru
      _
    // Predicated region
    $region6: #{linear_forward.1} parent=1 // pred_check
      _
    $region7: #{linear_forward.1} parent=1 // pred_check_branch
      %13 = sbr.rel (0) target = $region9
    $region8: #{linear_forward.1} parent=1 // pred_region
      %s15 = ssub.s32 2048, 2048
      %16 = vsyncadd [#allocation3], %s15
      %s17 = sshll.u32 [#allocation2], 4
      %s18 = int_to_ptr.vmem [resolvable:$true] %s17
      %23 = dma.hbm_to_vmem [thread:$0]  %s1, 2048, %s18, [#allocation3], 128, 128, 8
    $region9: #{linear_forward.1} parent=1 // pred_fallthru
      _
    // Predicated region
    $region10: #{linear_forward.1} parent=1 // pred_check
      _
    $region11: #{linear_forward.1} parent=1 // pred_check_branch
      %25 = sbr.rel (0) target = $region13
    $region12: #{linear_forward.1} parent=1 // pred_region
      _
    $region13: #{linear_forward.1} parent=1 // pred_fallthru
      _
    // Predicated region
    $region14: #{linear_forward.1} parent=1 // pred_check
      _
    $region15: #{linear_forward.1} parent=1 // pred_check_branch
      %27 = sbr.rel (0) target = $region17
    $region16: #{linear_forward.1} parent=1 // pred_region
      %28 = dma.done [#allocation3], 2048
    $region17: #{linear_forward.1} parent=1 // pred_fallthru
      _
    %v29 = vld [vmem:[%s0] sm:$0xff]
    %v30 = vld [vmem:[#allocation2] sm:$0xff]
    %v31 = vld [vmem:[#allocation2 + $0x8] sm:$0xff]
    %v32 = vld [vmem:[#allocation2 + $0x10] sm:$0xff]
    %v33 = vld [vmem:[#allocation2 + $0x18] sm:$0xff]
    %v34 = vld [vmem:[#allocation2 + $0x20] sm:$0xff]
    %v35 = vld [vmem:[#allocation2 + $0x28] sm:$0xff]
    %v36 = vld [vmem:[#allocation2 + $0x30] sm:$0xff]
    %v37 = vld [vmem:[#allocation2 + $0x38] sm:$0xff]
    %v38 = vld [vmem:[#allocation2 + $0x40] sm:$0xff]
    %v39 = vld [vmem:[#allocation2 + $0x48] sm:$0xff]
    %v40 = vld [vmem:[#allocation2 + $0x50] sm:$0xff]
    %v41 = vld [vmem:[#allocation2 + $0x58] sm:$0xff]
    %v42 = vld [vmem:[#allocation2 + $0x60] sm:$0xff]
    %v43 = vld [vmem:[#allocation2 + $0x68] sm:$0xff]
    %v44 = vld [vmem:[#allocation2 + $0x70] sm:$0xff]
    %v45 = vld [vmem:[#allocation2 + $0x78] sm:$0xff]
    %v46 = vld [vmem:[%s2] sm:$0x1]
    %v48 = vlaneseq
    %v49 = vshrl.u32 %v48, 7
    %v50 = vsub.s32 0, %v49
    %v51 = vrot.slane %v46, %v50
    %53 = vmatprep.subr.mxu0 0.0
    %54 = vmatpush1.msra.mxu0 %v30
    %55 = vmatprep.subr.mxu0 0.0
    %56 = vmatpush1.msra.mxu0 %v31
    %57 = vmatprep.subr.mxu0 0.0
    %58 = vmatpush1.msra.mxu0 %v32
    %59 = vmatprep.subr.mxu0 0.0
    %60 = vmatpush1.msra.mxu0 %v33
    %61 = vmatprep.subr.mxu0 0.0
    %62 = vmatpush1.msra.mxu0 %v34
    %63 = vmatprep.subr.mxu0 0.0
    %64 = vmatpush1.msra.mxu0 %v35
    %65 = vmatprep.subr.mxu0 0.0
    %66 = vmatpush1.msra.mxu0 %v36
    %67 = vmatprep.subr.mxu0 0.0
    %68 = vmatpush1.msra.mxu0 %v37
    %69 = vmatprep.subr.mxu0 0.0
    %70 = vmatpush1.msra.mxu0 %v38
    %71 = vmatprep.subr.mxu0 0.0
    %72 = vmatpush1.msra.mxu0 %v39
    %73 = vmatprep.subr.mxu0 0.0
    %74 = vmatpush1.msra.mxu0 %v40
    %75 = vmatprep.subr.mxu0 0.0
    %76 = vmatpush1.msra.mxu0 %v41
    %77 = vmatprep.subr.mxu0 0.0
    %78 = vmatpush1.msra.mxu0 %v42
    %79 = vmatprep.subr.mxu0 0.0
    %80 = vmatpush1.msra.mxu0 %v43
    %81 = vmatprep.subr.mxu0 0.0
    %82 = vmatpush1.msra.mxu0 %v44
    %83 = vmatprep.subr.mxu0 0.0
    %84 = vmatpush1.msra.mxu0 %v45
    %85 = vmatprep.subr.mxu0 0.0
    %86 = vmatpush1.msra.mxu0 0.0
    %87 = vmatprep.subr.mxu0 0.0
    %88 = vmatpush1.msra.mxu0 0.0
    %89 = vmatprep.subr.mxu0 0.0
    %90 = vmatpush1.msra.mxu0 0.0
    %91 = vmatprep.subr.mxu0 0.0
    %92 = vmatpush1.msra.mxu0 0.0
    %93 = vmatprep.subr.mxu0 0.0
    %94 = vmatpush1.msra.mxu0 0.0
    %95 = vmatprep.subr.mxu0 0.0
    %96 = vmatpush1.msra.mxu0 0.0
    %97 = vmatprep.subr.mxu0 0.0
    %98 = vmatpush1.msra.mxu0 0.0
    %99 = vmatprep.subr.mxu0 0.0
    %100 = vmatpush1.msra.mxu0 0.0
    %101 = vmatprep.subr.mxu0 0.0
    %102 = vmatpush1.msra.mxu0 0.0
    %103 = vmatprep.subr.mxu0 0.0
    %104 = vmatpush1.msra.mxu0 0.0
    %105 = vmatprep.subr.mxu0 0.0
    %106 = vmatpush1.msra.mxu0 0.0
    %107 = vmatprep.subr.mxu0 0.0
    %108 = vmatpush1.msra.mxu0 0.0
    %109 = vmatprep.subr.mxu0 0.0
    %110 = vmatpush1.msra.mxu0 0.0
    %111 = vmatprep.subr.mxu0 0.0
    %112 = vmatpush1.msra.mxu0 0.0
    %113 = vmatprep.subr.mxu0 0.0
    %114 = vmatpush1.msra.mxu0 0.0
    %115 = vmatprep.subr.mxu0 0.0
    %116 = vmatpush1.msra.mxu0 0.0
    %117 = vmatprep.mubr.f32.mxu0 0.0
    %118 = vmatmul.mubr.f32.gmra.mrb[0].mxu0 %v29
    %v119 = vpop.f32.mrb[0].mxu0
    %v120 = vadd.f32 %v51, %v119
    %v121 = vpop.f32.mrb[0].mxu0
    %122 = vdwg.mxu0
    %123 = vst [vmem:[#allocation5] sm:$0xff] %v120
    // Predicated region
    $region18: #{linear_forward.1} parent=1 // pred_check
      _
    $region19: #{linear_forward.1} parent=1 // pred_check_branch
      %125 = sbr.rel (0) target = $region21
    $region20: #{linear_forward.1} parent=1 // pred_region
      %s127 = ssub.s32 128, 128
      %128 = vsyncadd [#allocation4], %s127
      %s130 = sshll.u32 [#allocation5], 4
      %s131 = int_to_ptr.vmem [resolvable:$true] %s130
      %133 = dma.vmem_to_hbm [thread:$0]  %s131, 128, %s3, [#allocation4]
    $region21: #{linear_forward.1} parent=1 // pred_fallthru
      _
    // Predicated region
    $region22: #{linear_forward.1} parent=1 // pred_check
      _
    $region23: #{linear_forward.1} parent=1 // pred_check_branch
      %135 = sbr.rel (0) target = $region25
    $region24: #{linear_forward.1} parent=1 // pred_region
      %136 = dma.done [#allocation4], 128
    $region25: #{linear_forward.1} parent=1 // pred_fallthru
      _
    %137 = vsyncpa [#allocation3], 1
    %138 = vsyncpa [#allocation4], 1

</llo_original>
